<compile_context>
chip_gen: v7x
topology: tpu7x:2x2x1
jax: 0.10.0
libtpu: 0.0.40
codegen_flags: <defaults>
</compile_context>

<pallas_src>
import functools

import jax
import jax.numpy as jnp
from jax.experimental import pallas as pl
from jax.experimental.pallas import tpu as pltpu


# --------------------------------------------------------------------------
# In-kernel helpers
# --------------------------------------------------------------------------
def _split_position_limbs(pos_f32):
    """Split integer-valued f32 positions (|p| < 2^24) into three limbs, each
    exactly representable in bfloat16 (8-bit significand chunks), so the 0/1
    selection matmuls are exact even if the MXU rounds each f32 operand to
    bf16 per pass at default precision."""
    hi = jnp.floor(pos_f32 * (1.0 / 65536.0)) * 65536.0     # bits [23:16]
    rem = pos_f32 - hi
    mid = jnp.floor(rem * (1.0 / 256.0)) * 256.0            # bits [15:8]
    lo = rem - mid                                          # bits [7:0]
    return hi, mid, lo


def _expand_positions(pos_ref, sel_ref):
    """(t_f, k) packed positions -> per-lane positions, exactly.

    k == 1: plain (t_f, 1) column, broadcast over lanes by the caller.
    k  > 1: three tiny 0/1 selection matmuls on the otherwise idle MXU."""
    pos = pos_ref[0].astype(jnp.float32)                    # (t_f, k)
    k = sel_ref.shape[0]
    if k == 1:
        return pos                                          # (t_f, 1)
    hi, mid, lo = _split_position_limbs(pos)
    sel = sel_ref[...]                                      # (k, width) 0/1
    acc = jnp.dot(hi, sel, preferred_element_type=jnp.float32)
    acc = acc + jnp.dot(mid, sel, preferred_element_type=jnp.float32)
    acc = acc + jnp.dot(lo, sel, preferred_element_type=jnp.float32)
    return acc                                              # (t_f, width)


def _rope_full_kernel(pos_ref, inv_ref, sel_ref, cos_ref, sin_ref, *, scaling):
    # pos_ref : (1, t_f, k)   int32    packed positions
    # inv_ref : (1, L)        float32  inv-freq pattern (both halves, tiled x k)
    # sel_ref : (k, L)        float32  0/1 lane-ownership matrix
    # cos/sin : (1, t_f, L)   out dtype == x.dtype
    pos_lane = _expand_positions(pos_ref, sel_ref)          # (t_f, L) or (t_f, 1)
    emb = pos_lane * inv_ref[...]                           # (t_f, L)

    cos = jnp.cos(emb)
    if scaling != 1.0:                                      # compile-time constant
        cos = cos * scaling
    cos_ref[0] = cos.astype(cos_ref.dtype)

    sin = jnp.sin(emb)
    if scaling != 1.0:
        sin = sin * scaling
    sin_ref[0] = sin.astype(sin_ref.dtype)


def _rope_compact_kernel(pos_ref, inv_ref, sel_ref, dup_ref, cos_ref, sin_ref,
                         *, scaling):
    # Compact variant (bf16 outputs only): evaluate cos/sin once per distinct
    # angle (C = k*half lanes) and duplicate to L = k*rot_dim output lanes via
    # a 0/1 MXU matmul.  A default-precision bf16 pass rounds each cos/sin
    # value exactly like the final bf16 store would, so the result matches
    # the full-lane path while doing half the transcendental work.
    # pos_ref : (1, t_f, k)  int32
    # inv_ref : (1, C)       float32   inv-freq pattern (one half, tiled x k)
    # sel_ref : (k, C)       float32   0/1 lane-ownership matrix
    # dup_ref : (C, L)       float32   0/1 half-duplication matrix
    # cos/sin : (1, t_f, L)
    pos_lane = _expand_positions(pos_ref, sel_ref)          # (t_f, C) or (t_f, 1)
    emb = pos_lane * inv_ref[...]                           # (t_f, C)
    dup = dup_ref[...]                                      # (C, L)

    cos = jnp.cos(emb)
    if scaling != 1.0:
        cos = cos * scaling
    cos_ref[0] = jnp.dot(cos, dup,
                         preferred_element_type=jnp.float32).astype(cos_ref.dtype)

    sin = jnp.sin(emb)
    if scaling != 1.0:
        sin = sin * scaling
    sin_ref[0] = jnp.dot(sin, dup,
                         preferred_element_type=jnp.float32).astype(sin_ref.dtype)


# --------------------------------------------------------------------------
# Parameter setup (plain JAX, done once)
# --------------------------------------------------------------------------
def compute_default_rope_parameters(head_dim, rope_theta, partial_rotary_factor=1.0):
    dim = int(head_dim * partial_rotary_factor)
    attention_factor = 1.0
    exponents = jnp.arange(0, dim, 2, dtype=jnp.float32) / float(dim)
    inv_freq = 1.0 / (rope_theta ** exponents)               # (dim // 2,)
    return inv_freq, attention_factor


def _smallest_fold(unit, seq, max_width):
    """Smallest k >= 1 with (k*unit) % 128 == 0, k | seq and k*unit <= max_width."""
    k = 1
    while k * unit <= max_width:
        if (k * unit) % 128 == 0 and seq % k == 0:
            return k
        k += 1
    return None


# --------------------------------------------------------------------------
# Wrapper
# --------------------------------------------------------------------------
def qwen2_rotary_embedding(x, position_ids, *, head_dim, rope_theta=10000.0,
                           partial_rotary_factor=1.0):
    """Returns (cos, sin), each of shape (bs, seq, rot_dim) in x.dtype,
    where rot_dim = int(head_dim * partial_rotary_factor)."""
    bs, seq = position_ids.shape
    inv_freq, attention_scaling = compute_default_rope_parameters(
        head_dim, rope_theta, partial_rotary_factor)
    half = int(inv_freq.shape[0])
    rot_dim = 2 * half
    out_dtype = x.dtype
    itemsize = jnp.dtype(out_dtype).itemsize

    # NOTE: positions are exact in float32 only up to 2^24; fine for current
    # context lengths (the PyTorch reference also computes the angles in f32).

    # ---- lane folding: pack k consecutive positions per output row --------
    # Compact (dedup-half) path only for bf16 outputs, where the bf16 MXU
    # pass used for duplication rounds exactly like the final cast.
    use_compact = out_dtype == jnp.bfloat16
    k = None
    if use_compact:
        k = _smallest_fold(half, seq, max_width=256)   # keep dup matmul cheap
        if k is None:
            use_compact = False
    if k is None:
        k = _smallest_fold(rot_dim, seq, max_width=1024)
    if k is None:
        # TODO(synk): no 128-multiple fold exists (e.g. decode seq==1 or a
        # prime seq with small head_dim) -> sub-128-lane masked stores.
        k = 1
        use_compact = False

    lanes = k * rot_dim                      # output row width L (store width)
    lanes_c = k * half                       # compact width C (compact path)
    s_f = seq // k
    pos_folded = position_ids.reshape(bs, s_f, k).astype(jnp.int32)

    # sel[j, l] = 1 iff lane l belongs to packed position j.
    sel_width = lanes_c if use_compact else lanes
    per_pos = half if use_compact else rot_dim
    sel = jnp.repeat(jnp.eye(k, dtype=jnp.float32), per_pos, axis=1)  # (k, sel_width)

    if use_compact:
        inv_tiled = jnp.tile(inv_freq, k).reshape(1, lanes_c)
        # dup[c, l] = 1 iff output lane l duplicates compact lane c.
        l_idx = jnp.arange(lanes)
        c_of_l = (l_idx // rot_dim) * half + (l_idx % rot_dim) % half
        dup = (jnp.arange(lanes_c)[:, None] == c_of_l[None, :]).astype(jnp.float32)
    else:
        inv_tiled = jnp.tile(jnp.concatenate([inv_freq, inv_freq]),
                             k).reshape(1, lanes)

    # ---- tile the folded sequence axis -------------------------------------
    # ~512K output elements per block; blocks stay a multiple of 8 sublanes.
    target_elems = 512 * 1024
    if s_f <= 8:
        t_f = s_f
    else:
        t_f = max(8, min(s_f, (target_elems // lanes) // 8 * 8))
        if bs == 1 and s_f >= 16:
            # keep >= 2 grid steps so both v7x TensorCores get work
            t_f = min(t_f, ((s_f + 1) // 2 + 7) // 8 * 8)
        t_f = min(t_f, s_f)
    grid = (bs, pl.cdiv(s_f, t_f))

    # Explicit scoped-VMEM budget: 2 outputs x 2 pipeline buffers, f32
    # intermediates for emb/cos/sin, position blocks and the tiny constants.
    blk_out_bytes = t_f * lanes * itemsize
    f32_tile_bytes = t_f * lanes * 4
    vmem_est = (2 * 2 * blk_out_bytes
                + 6 * f32_tile_bytes
                + 2 * 2 * t_f * k * 4
                + (k + 1) * lanes * 4
                + (lanes_c * lanes * 4 if use_compact else 0))
    vmem_limit = int(min(max(int(vmem_est * 1.5), 32 * 1024 * 1024),
                         48 * 1024 * 1024))

    out_shape = (
        jax.ShapeDtypeStruct((bs, s_f, lanes), out_dtype),   # cos (folded)
        jax.ShapeDtypeStruct((bs, s_f, lanes), out_dtype),   # sin (folded)
    )
    out_specs = (
        pl.BlockSpec((1, t_f, lanes), lambda b, s: (b, s, 0)),
        pl.BlockSpec((1, t_f, lanes), lambda b, s: (b, s, 0)),
    )
    pos_spec = pl.BlockSpec((1, t_f, k), lambda b, s: (b, s, 0))
    inv_spec = pl.BlockSpec((1, sel_width), lambda b, s: (0, 0))
    sel_spec = pl.BlockSpec((k, sel_width), lambda b, s: (0, 0))

    scaling = float(attention_scaling)
    if use_compact:
        kernel = functools.partial(_rope_compact_kernel, scaling=scaling)
        operands = (pos_folded, inv_tiled, sel, dup)
        in_specs = [pos_spec, inv_spec, sel_spec,
                    pl.BlockSpec((lanes_c, lanes), lambda b, s: (0, 0))]
        transcendentals = 2 * bs * seq * half
        flops = (4 * bs * seq * rot_dim
                 + 6 * bs * s_f * k * sel_width          # position limb matmuls
                 + 4 * bs * s_f * lanes_c * lanes)       # dup matmuls
    else:
        kernel = functools.partial(_rope_full_kernel, scaling=scaling)
        operands = (pos_folded, inv_tiled, sel)
        in_specs = [pos_spec, inv_spec, sel_spec]
        transcendentals = 2 * bs * seq * rot_dim
        flops = 4 * bs * seq * rot_dim + 6 * bs * s_f * k * sel_width

    cost = pl.CostEstimate(
        flops=int(flops),
        transcendentals=int(transcendentals),
        bytes_accessed=int(2 * bs * seq * rot_dim * itemsize
                           + position_ids.size * 4),
    )

    cos_f, sin_f = pl.pallas_call(
        kernel,
        out_shape=out_shape,
        grid=grid,
        in_specs=in_specs,
        out_specs=out_specs,
        compiler_params=pltpu.CompilerParams(
            dimension_semantics=("parallel", "parallel"),
            vmem_limit_bytes=vmem_limit),
        cost_estimate=cost,
    )(*operands)

    # Row-major bytes of (bs, s_f, k*rot_dim) are identical to
    # (bs, seq, rot_dim): this reshape is free.
    cos = cos_f.reshape(bs, seq, rot_dim)
    sin = sin_f.reshape(bs, seq, rot_dim)
    return cos, sin


# --------------------------------------------------------------------------
# Pure-JAX reference and self-test
# --------------------------------------------------------------------------
def _reference(x, position_ids, head_dim, rope_theta=10000.0,
               partial_rotary_factor=1.0):
    inv_freq, scaling = compute_default_rope_parameters(
        head_dim, rope_theta, partial_rotary_factor)
    freqs = position_ids.astype(jnp.float32)[:, :, None] * inv_freq[None, None, :]
    emb = jnp.concatenate([freqs, freqs], axis=-1)
    return ((jnp.cos(emb) * scaling).astype(x.dtype),
            (jnp.sin(emb) * scaling).astype(x.dtype))


if __name__ == "__main__":
    key = jax.random.PRNGKey(0)

    # Config 1: small Qwen2-like config (hidden=64, 2 heads -> head_dim=32), f32.
    bs, seq, hidden, head_dim = 2, 8, 64, 32
    cache_len = 5
    rope_theta = 10000.0
    x = jax.random.normal(key, (bs, seq, hidden), dtype=jnp.float32)
    position_ids = (cache_len + jnp.arange(seq, dtype=jnp.int32))[None, :]
    position_ids = position_ids + 17 * jnp.arange(bs, dtype=jnp.int32)[:, None]

    cos, sin = qwen2_rotary_embedding(
        x, position_ids, head_dim=head_dim, rope_theta=rope_theta)
    jax.block_until_ready((cos, sin))

    cos_ref, sin_ref = _reference(x, position_ids, head_dim, rope_theta)
    assert cos.shape == (bs, seq, head_dim) and sin.shape == (bs, seq, head_dim)
    assert cos.dtype == x.dtype and sin.dtype == x.dtype
    assert jnp.allclose(cos, cos_ref, atol=1e-5, rtol=1e-5)
    assert jnp.allclose(sin, sin_ref, atol=1e-5, rtol=1e-5)

    # Config 2: head_dim=128, bf16, long-context positions (exercises the
    # compact dedup-half path and the exact limb-split expansion, pos >> 256).
    bs2, seq2, hidden2, head_dim2 = 1, 16, 256, 128
    theta2 = 1000000.0
    x2 = jax.random.normal(key, (bs2, seq2, hidden2), dtype=jnp.bfloat16)
    pos2 = (50000 + jnp.arange(seq2, dtype=jnp.int32))[None, :]

    cos2, sin2 = qwen2_rotary_embedding(x2, pos2, head_dim=head_dim2,
                                        rope_theta=theta2)
    jax.block_until_ready((cos2, sin2))

    cos2_ref, sin2_ref = _reference(x2, pos2, head_dim2, theta2)
    assert cos2.shape == (bs2, seq2, head_dim2) and cos2.dtype == jnp.bfloat16
    assert jnp.allclose(cos2.astype(jnp.float32), cos2_ref.astype(jnp.float32),
                        atol=1e-2)
    assert jnp.allclose(sin2.astype(jnp.float32), sin2_ref.astype(jnp.float32),
                        atol=1e-2)

    # Config 3: f32 with positions >= 4096 checks exactness of the limb-split
    # MXU position expansion on the full-lane path (head_dim=64 -> fold k=2).
    bs3, seq3, hidden3, head_dim3 = 1, 8, 128, 64
    x3 = jax.random.normal(key, (bs3, seq3, hidden3), dtype=jnp.float32)
    pos3 = (8192 + jnp.arange(seq3, dtype=jnp.int32))[None, :]

    cos3, sin3 = qwen2_rotary_embedding(x3, pos3, head_dim=head_dim3,
                                        rope_theta=rope_theta)
    jax.block_until_ready((cos3, sin3))

    cos3_ref, sin3_ref = _reference(x3, pos3, head_dim3, rope_theta)
    assert jnp.allclose(cos3, cos3_ref, atol=1e-4, rtol=1e-4)
    assert jnp.allclose(sin3, sin3_ref, atol=1e-4, rtol=1e-4)

    print("KERNEL_OK")
</pallas_src>

<mosaic_0001>
module attributes {stable_mosaic.version = 11 : i64} {
  func.func @_rope_full_kernel(%arg0: i32, %arg1: i32, %arg2: memref<1x2x4xi32, #tpu.memory_space<vmem>>, %arg3: memref<1x128xf32, #tpu.memory_space<vmem>>, %arg4: memref<4x128xf32, #tpu.memory_space<vmem>>, %arg5: memref<1x2x128xf32, #tpu.memory_space<vmem>>, %arg6: memref<1x2x128xf32, #tpu.memory_space<vmem>>) attributes {dimension_semantics = [#tpu.dimension_semantics<parallel>, #tpu.dimension_semantics<parallel>], iteration_bounds = array<i64: 2, 1>, scalar_prefetch = 0 : i64, scratch_operands = 0 : i64, tpu.core_type = #tpu.core_type<tc>, window_params = [{transform_indices = @transform_0, window_bounds = array<i64: 1, 2, 4>}, {pipeline_mode = #tpu.pipeline_mode<synchronous>, transform_indices = @transform_1, window_bounds = array<i64: 1, 128>}, {pipeline_mode = #tpu.pipeline_mode<synchronous>, transform_indices = @transform_2, window_bounds = array<i64: 4, 128>}, {transform_indices = @transform_3, window_bounds = array<i64: 1, 2, 128>}, {transform_indices = @transform_4, window_bounds = array<i64: 1, 2, 128>}]} {
    %c0 = arith.constant 0 : index
    %c0_0 = arith.constant 0 : index
    %c0_1 = arith.constant 0 : index
    %0 = vector.load %arg2[%c0, %c0_0, %c0_1] : memref<1x2x4xi32, #tpu.memory_space<vmem>>, vector<1x2x4xi32>
    %1 = vector.shape_cast %0 : vector<1x2x4xi32> to vector<2x4xi32>
    %2 = arith.sitofp %1 : vector<2x4xi32> to vector<2x4xf32>
    %cst = arith.constant 1.52587891E-5 : f32
    %3 = vector.broadcast %cst : f32 to vector<2x4xf32>
    %4 = arith.mulf %2, %3 : vector<2x4xf32>
    %5 = math.floor %4 : vector<2x4xf32>
    %cst_2 = arith.constant 6.553600e+04 : f32
    %6 = vector.broadcast %cst_2 : f32 to vector<2x4xf32>
    %7 = arith.mulf %5, %6 : vector<2x4xf32>
    %8 = arith.subf %2, %7 : vector<2x4xf32>
    %cst_3 = arith.constant 3.906250e-03 : f32
    %9 = vector.broadcast %cst_3 : f32 to vector<2x4xf32>
    %10 = arith.mulf %8, %9 : vector<2x4xf32>
    %11 = math.floor %10 : vector<2x4xf32>
    %cst_4 = arith.constant 2.560000e+02 : f32
    %12 = vector.broadcast %cst_4 : f32 to vector<2x4xf32>
    %13 = arith.mulf %11, %12 : vector<2x4xf32>
    %14 = arith.subf %8, %13 : vector<2x4xf32>
    %c0_5 = arith.constant 0 : index
    %c0_6 = arith.constant 0 : index
    %15 = vector.load %arg4[%c0_5, %c0_6] : memref<4x128xf32, #tpu.memory_space<vmem>>, vector<4x128xf32>
    %cst_7 = arith.constant dense<0.000000e+00> : vector<2x128xf32>
    %16 = tpu.matmul %7, %15, %cst_7 {dimension_numbers = #tpu.dot_dimension_numbers<[1], [0], [0], [1], [0, 0, 1, 1], [], []>} : vector<2x4xf32>, vector<4x128xf32>, vector<2x128xf32> -> vector<2x128xf32>
    %cst_8 = arith.constant dense<0.000000e+00> : vector<2x128xf32>
    %17 = tpu.matmul %13, %15, %cst_8 {dimension_numbers = #tpu.dot_dimension_numbers<[1], [0], [0], [1], [0, 0, 1, 1], [], []>} : vector<2x4xf32>, vector<4x128xf32>, vector<2x128xf32> -> vector<2x128xf32>
    %18 = arith.addf %16, %17 : vector<2x128xf32>
    %cst_9 = arith.constant dense<0.000000e+00> : vector<2x128xf32>
    %19 = tpu.matmul %14, %15, %cst_9 {dimension_numbers = #tpu.dot_dimension_numbers<[1], [0], [0], [1], [0, 0, 1, 1], [], []>} : vector<2x4xf32>, vector<4x128xf32>, vector<2x128xf32> -> vector<2x128xf32>
    %20 = arith.addf %18, %19 : vector<2x128xf32>
    %c0_10 = arith.constant 0 : index
    %c0_11 = arith.constant 0 : index
    %21 = vector.load %arg3[%c0_10, %c0_11] : memref<1x128xf32, #tpu.memory_space<vmem>>, vector<1x128xf32>
    %22 = vector.broadcast %21 : vector<1x128xf32> to vector<2x128xf32>
    %23 = arith.mulf %20, %22 : vector<2x128xf32>
    %24 = math.cos %23 : vector<2x128xf32>
    %c0_12 = arith.constant 0 : index
    %c0_13 = arith.constant 0 : index
    %c0_14 = arith.constant 0 : index
    %25 = vector.load %arg5[%c0_12, %c0_13, %c0_14] : memref<1x2x128xf32, #tpu.memory_space<vmem>>, vector<1x2x128xf32>
    %26 = vector.shape_cast %25 : vector<1x2x128xf32> to vector<2x128xf32>
    %27 = vector.shape_cast %24 : vector<2x128xf32> to vector<1x2x128xf32>
    tpu.vector_store %arg5[%c0_12, %c0_13, %c0_14], %27 {strides = array<i32>} : memref<1x2x128xf32, #tpu.memory_space<vmem>>, vector<1x2x128xf32>,
    %28 = math.sin %23 : vector<2x128xf32>
    %c0_15 = arith.constant 0 : index
    %c0_16 = arith.constant 0 : index
    %c0_17 = arith.constant 0 : index
    %29 = vector.load %arg6[%c0_15, %c0_16, %c0_17] : memref<1x2x128xf32, #tpu.memory_space<vmem>>, vector<1x2x128xf32>
    %30 = vector.shape_cast %29 : vector<1x2x128xf32> to vector<2x128xf32>
    %31 = vector.shape_cast %28 : vector<2x128xf32> to vector<1x2x128xf32>
    tpu.vector_store %arg6[%c0_15, %c0_16, %c0_17], %31 {strides = array<i32>} : memref<1x2x128xf32, #tpu.memory_space<vmem>>, vector<1x2x128xf32>,
    return
  }
  func.func @transform_0(%arg0: i32, %arg1: i32) -> (i32, i32, i32) {
    %c0_i32 = arith.constant 0 : i32
    %c0_i32_0 = arith.constant 0 : i32
    return %arg0, %arg1, %c0_i32 : i32, i32, i32
  }
  func.func @transform_1(%arg0: i32, %arg1: i32) -> (i32, i32) {
    %c0_i32 = arith.constant 0 : i32
    %c0_i32_0 = arith.constant 0 : i32
    %c0_i32_1 = arith.constant 0 : i32
    return %c0_i32, %c0_i32_0 : i32, i32
  }
  func.func @transform_2(%arg0: i32, %arg1: i32) -> (i32, i32) {
    %c0_i32 = arith.constant 0 : i32
    %c0_i32_0 = arith.constant 0 : i32
    %c0_i32_1 = arith.constant 0 : i32
    return %c0_i32, %c0_i32_0 : i32, i32
  }
  func.func @transform_3(%arg0: i32, %arg1: i32) -> (i32, i32, i32) {
    %c0_i32 = arith.constant 0 : i32
    %c0_i32_0 = arith.constant 0 : i32
    return %arg0, %arg1, %c0_i32 : i32, i32, i32
  }
  func.func @transform_4(%arg0: i32, %arg1: i32) -> (i32, i32, i32) {
    %c0_i32 = arith.constant 0 : i32
    %c0_i32_0 = arith.constant 0 : i32
    return %arg0, %arg1, %c0_i32 : i32, i32, i32
  }
}

</mosaic_0001>

<llo_original>
// kernel: tpu_custom_call.1
$region0: #{tpu_custom_call.1}
  #allocation0 [shape = 'u32[]', space=smem, size = 0x4, offset = 0x4, fixed_abs, tag = 'smem constant byte address 0x4 - core index']
  #allocation1 [shape = 'u32[144,128]{1,0:T(1,128)}', space=vmem, size = 0x12000, scoped, tag = 'internal scratch']
  %s0 = inlined_call_operand.hbm [shape: s32[2,2,4], index: 0, kind: input, shape index: {}]
  %s1 = inlined_call_operand.vmem [shape: f32[1,128], index: 1, kind: input, shape index: {}]
  %s2 = inlined_call_operand.vmem [shape: f32[4,128], index: 2, kind: input, shape index: {}]
  %s3 = inlined_call_operand.hbm [shape: f32[2,2,128], index: 3, kind: output, shape index: {0}]
  %s4 = inlined_call_operand.hbm [shape: f32[2,2,128], index: 4, kind: output, shape index: {1}]
  %5 = xla_tuple %s3, %s4
  %s6 = sld [smem:[#allocation0]]
  $region57: #{tpu_custom_call.1} parent=0
    _
  %s8 = ssub.s32 1, %s6
  %s9 = scalar_select 0, %s8, %s6
  $region1: #{tpu_custom_call.1} parent=0
    #allocation2 [shape = 'u8[2048]{0}', space=vmem, size = 0x800, scoped, tag = 'input window, operand 0']
    #allocation3 [shape = 's32[2]{0}', space=sflag, size = 0x8, scoped, tag = 'scoped memory for tpu_custom_call.1']
    #allocation4 [shape = 's32[2]{0}', space=sflag, size = 0x8, scoped, tag = 'scoped memory for tpu_custom_call.1']
    #allocation5 [shape = 'u8[2048]{0}', space=vmem, size = 0x800, scoped, tag = 'output window, operand 0']
    #allocation6 [shape = 'u8[2048]{0}', space=vmem, size = 0x800, scoped, tag = 'output window, operand 1']
    #allocation7 [shape = 's32[2]{0}', space=sflag, size = 0x8, scoped, tag = 'scoped memory for tpu_custom_call.1']
    %10 = vsyncpa [#allocation3], 0
    %s11 = scalar_lea.sflag [#allocation3], 1
    %12 = vsyncpa %s11, 0
    %13 = vsyncpa [#allocation4], 0
    %s14 = scalar_lea.sflag [#allocation4], 1
    %15 = vsyncpa %s14, 0
    %16 = vsyncpa [#allocation7], 0
    %s17 = scalar_lea.sflag [#allocation7], 1
    %18 = vsyncpa %s17, 0
    loop: start=0, step=1, limit=4
    $region2: #{tpu_custom_call.1} parent=1 // loop_pre_header
      _
    $region3: #{tpu_custom_call.1} parent=1 // loop_header
      %s20 = sphi 0, %s24
      %p21 = scmp.ge.s32.totalorder %s20, 4
      %s27 = sphi 0, %s39
      %s28 = sphi 0, %s35
      %s29 = sphi 0, %s27
      %s30 = sphi 0, %s28
      %s31 = sphi 0, %s29
      %s32 = sphi 0, %s30
      %s44 = sphi 0, %s46
      %s47 = sphi 0, %s44
      %s48 = sphi 0, %s47
      %s64 = sphi 0, %s48
      %s68 = sphi 0, %s68
      %s70 = sphi 0, %s68
      %s71 = sphi 0, %s70
      %s85 = sphi 0, %s71
      %s89 = sphi 0, %s89
      %s91 = sphi 0, %s89
      %s92 = sphi 0, %s91
      %s106 = sphi 0, %s92
      %s114 = sphi 0, %s116
      %s117 = sphi 0, %s114
      %s118 = sphi 0, %s117
      %s134 = sphi 0, %s118
      %s142 = sphi 0, %s144
      %s145 = sphi 0, %s142
      %s146 = sphi 0, %s145
      %s162 = sphi 0, %s146
    $region4: #{tpu_custom_call.1} parent=1 // loop_header_branch
      %23 = sbr.rel (%p21) target = $region8
    $region5: #{tpu_custom_call.1} parent=1 // loop_body
      %s25 = ssub.s32 %s20, 1
      %s26 = ssub.s32 %s20, 2
      %s33 = sadd.s32 1, %s28
      %p34 = scmp.ge.s32.totalorder %s33, 1
      %s35 = scalar_select %p34, 0, %s33
      %s36 = sadd.s32 1, %s27
      %s37 = scalar_select %p34, %s36, %s27
      %p38 = scmp.ge.s32.totalorder %s37, 2
      %s39 = scalar_select %p38, 0, %s37
      %s40 = ssub.s32 %s27, %s39
      %s41 = ssub.s32 %s28, %s35
      %s42 = sor.u32 %s40, %s41
      %p43 = scmp.eq.s32.totalorder %s42, 0
      %s45 = sadd.s32 %s44, 1
      %s46 = scalar_select %p43, %s44, %s45
      %p49 = pneg %p43
      %p50 = scmp.eq.s32.totalorder %s20, 1
      %p51 = por %p49, %p50
      %p52 = scmp.ne.s32.totalorder %s44, %s47
      %p53 = scmp.eq.s32.totalorder %s20, 0
      %p54 = por %p52, %p53
      %p55 = scmp.ne.s32.totalorder %s44, %s47
      %p56 = scmp.eq.s32.totalorder %s25, 1
      %p57 = por %p55, %p56
      %p58 = scmp.ne.s32.totalorder %s47, %s48
      %p59 = scmp.eq.s32.totalorder %s25, 0
      %p60 = por %p58, %p59
      %p61 = scmp.ne.s32.totalorder %s47, %s48
      %p62 = scmp.eq.s32.totalorder %s26, 1
      %p63 = por %p61, %p62
      %p65 = scmp.ne.s32.totalorder %s48, %s64
      %p66 = scmp.eq.s32.totalorder %s26, 0
      %p67 = por %p65, %p66
      %s69 = sadd.s32 %s68, 1
      %p72 = scmp.eq.s32.totalorder %s20, 1
      %p73 = scmp.ne.s32.totalorder %s68, %s70
      %p74 = scmp.eq.s32.totalorder %s20, 0
      %p75 = por %p73, %p74
      %p76 = scmp.ne.s32.totalorder %s68, %s70
      %p77 = scmp.eq.s32.totalorder %s25, 1
      %p78 = por %p76, %p77
      %p79 = scmp.ne.s32.totalorder %s70, %s71
      %p80 = scmp.eq.s32.totalorder %s25, 0
      %p81 = por %p79, %p80
      %p82 = scmp.ne.s32.totalorder %s70, %s71
      %p83 = scmp.eq.s32.totalorder %s26, 1
      %p84 = por %p82, %p83
      %p86 = scmp.ne.s32.totalorder %s71, %s85
      %p87 = scmp.eq.s32.totalorder %s26, 0
      %p88 = por %p86, %p87
      %s90 = sadd.s32 %s89, 1
      %p93 = scmp.eq.s32.totalorder %s20, 1
      %p94 = scmp.ne.s32.totalorder %s89, %s91
      %p95 = scmp.eq.s32.totalorder %s20, 0
      %p96 = por %p94, %p95
      %p97 = scmp.ne.s32.totalorder %s89, %s91
      %p98 = scmp.eq.s32.totalorder %s25, 1
      %p99 = por %p97, %p98
      %p100 = scmp.ne.s32.totalorder %s91, %s92
      %p101 = scmp.eq.s32.totalorder %s25, 0
      %p102 = por %p100, %p101
      %p103 = scmp.ne.s32.totalorder %s91, %s92
      %p104 = scmp.eq.s32.totalorder %s26, 1
      %p105 = por %p103, %p104
      %p107 = scmp.ne.s32.totalorder %s92, %s106
      %p108 = scmp.eq.s32.totalorder %s26, 0
      %p109 = por %p107, %p108
      %s110 = ssub.s32 %s27, %s39
      %s111 = ssub.s32 %s28, %s35
      %s112 = sor.u32 %s110, %s111
      %p113 = scmp.eq.s32.totalorder %s112, 0
      %s115 = sadd.s32 %s114, 1
      %s116 = scalar_select %p113, %s114, %s115
      %p119 = pneg %p113
      %p120 = scmp.eq.s32.totalorder %s20, 1
      %p121 = por %p119, %p120
      %p122 = scmp.ne.s32.totalorder %s114, %s117
      %p123 = scmp.eq.s32.totalorder %s20, 0
      %p124 = por %p122, %p123
      %p125 = scmp.ne.s32.totalorder %s114, %s117
      %p126 = scmp.eq.s32.totalorder %s25, 1
      %p127 = por %p125, %p126
      %p128 = scmp.ne.s32.totalorder %s117, %s118
      %p129 = scmp.eq.s32.totalorder %s25, 0
      %p130 = por %p128, %p129
      %p131 = scmp.ne.s32.totalorder %s117, %s118
      %p132 = scmp.eq.s32.totalorder %s26, 1
      %p133 = por %p131, %p132
      %p135 = scmp.ne.s32.totalorder %s118, %s134
      %p136 = scmp.eq.s32.totalorder %s26, 0
      %p137 = por %p135, %p136
      %s138 = ssub.s32 %s27, %s39
      %s139 = ssub.s32 %s28, %s35
      %s140 = sor.u32 %s138, %s139
      %p141 = scmp.eq.s32.totalorder %s140, 0
      %s143 = sadd.s32 %s142, 1
      %s144 = scalar_select %p141, %s142, %s143
      %p147 = pneg %p141
      %p148 = scmp.eq.s32.totalorder %s20, 1
      %p149 = por %p147, %p148
      %p150 = scmp.ne.s32.totalorder %s142, %s145
      %p151 = scmp.eq.s32.totalorder %s20, 0
      %p152 = por %p150, %p151
      %p153 = scmp.ne.s32.totalorder %s142, %s145
      %p154 = scmp.eq.s32.totalorder %s25, 1
      %p155 = por %p153, %p154
      %p156 = scmp.ne.s32.totalorder %s145, %s146
      %p157 = scmp.eq.s32.totalorder %s25, 0
      %p158 = por %p156, %p157
      %p159 = scmp.ne.s32.totalorder %s145, %s146
      %p160 = scmp.eq.s32.totalorder %s26, 1
      %p161 = por %p159, %p160
      %p163 = scmp.ne.s32.totalorder %s146, %s162
      %p164 = scmp.eq.s32.totalorder %s26, 0
      %p165 = por %p163, %p164
      %p166 = scmp.le.s32.totalorder 1, %s20
      %p167 = scmp.lt.s32.totalorder %s20, 3
      %p168 = pnand %p166, %p167
      %p169 = pneg %p168
      // Predicated region
      $region9: #{tpu_custom_call.1} parent=5 // pred_check
        _
      $region10: #{tpu_custom_call.1} parent=5 // pred_check_branch
        %171 = sbr.rel (%p168) target = $region12
      $region11: #{tpu_custom_call.1} parent=5 // pred_region
        %s172 = ssub.s32 %s20, 1
        // Predicated region
        $region13: #{tpu_custom_call.1} parent=11 // pred_check
          %p173 = pneg %p81
        $region14: #{tpu_custom_call.1} parent=11 // pred_check_branch
          %175 = sbr.rel (%p173) target = $region16
        $region15: #{tpu_custom_call.1} parent=11 // pred_region
          _
        $region16: #{tpu_custom_call.1} parent=11 // pred_fallthru
          _
        // Predicated region
        $region17: #{tpu_custom_call.1} parent=11 // pred_check
          %p176 = pneg %p102
        $region18: #{tpu_custom_call.1} parent=11 // pred_check_branch
          %178 = sbr.rel (%p176) target = $region20
        $region19: #{tpu_custom_call.1} parent=11 // pred_region
          _
        $region20: #{tpu_custom_call.1} parent=11 // pred_fallthru
          _
      $region12: #{tpu_custom_call.1} parent=5 // pred_fallthru
        _
      %p179 = scmp.lt.s32.totalorder %s20, 2
      // Predicated region
      $region21: #{tpu_custom_call.1} parent=5 // pred_check
        %p180 = pneg %p179
      $region22: #{tpu_custom_call.1} parent=5 // pred_check_branch
        %182 = sbr.rel (%p180) target = $region24
      $region23: #{tpu_custom_call.1} parent=5 // pred_region
        // Predicated region
        $region25: #{tpu_custom_call.1} parent=23 // pred_check
          %p183 = pneg %p54
        $region26: #{tpu_custom_call.1} parent=23 // pred_check_branch
          %185 = sbr.rel (%p183) target = $region28
        $region27: #{tpu_custom_call.1} parent=23 // pred_region
          %s186 = sand.u32 %s44, 1
          %s187 = scalar_lea.sflag [#allocation3], %s186
          %s188 = sand.u32 %s44, 1
          %s189 = smul.addr %s188, 2
          %s190 = scalar_lea.vmem [#allocation2], %s189
          %s192 = ssub.s32 32, 32
          %193 = vsyncadd %s187, %s192
          %s194 = sadd.s32 %s28, %s27
          %s195 = smul.addr %s194, 32
          %s196 = scalar_lea.hbm %s0, %s195
          %s198 = sshll.u32 %s190, 4
          %s199 = int_to_ptr.vmem [resolvable:$true] %s198
          %201 = dma.hbm_to_vmem [thread:$0]  %s196, 32, %s199, %s187
        $region28: #{tpu_custom_call.1} parent=23 // pred_fallthru
          _
      $region24: #{tpu_custom_call.1} parent=5 // pred_fallthru
        _
      %p202 = scmp.le.s32.totalorder 1, %s20
      %p203 = scmp.lt.s32.totalorder %s20, 3
      %p204 = pnand %p202, %p203
      %p205 = pneg %p204
      // Predicated region
      $region29: #{tpu_custom_call.1} parent=5 // pred_check
        _
      $region30: #{tpu_custom_call.1} parent=5 // pred_check_branch
        %207 = sbr.rel (%p204) target = $region32
      $region31: #{tpu_custom_call.1} parent=5 // pred_region
        %s208 = ssub.s32 %s20, 1
        %s209 = sand.u32 %s47, 1
        %s210 = scalar_lea.sflag [#allocation3], %s209
        %s211 = sand.u32 %s47, 1
        %s212 = smul.addr %s211, 2
        %s213 = scalar_lea.vmem [#allocation2], %s212
        // Predicated region
        $region33: #{tpu_custom_call.1} parent=31 // pred_check
          %p214 = pneg %p60
        $region34: #{tpu_custom_call.1} parent=31 // pred_check_branch
          %216 = sbr.rel (%p214) target = $region36
        $region35: #{tpu_custom_call.1} parent=31 // pred_region
          %217 = dma.done %s210, 32
        $region36: #{tpu_custom_call.1} parent=31 // pred_fallthru
          _
        %s218 = sand.u32 %s47, 1
        %s219 = scalar_lea.sflag [#allocation3], %s218
        %s220 = sand.u32 %s47, 1
        %s221 = smul.addr %s220, 2
        %s222 = scalar_lea.vmem [#allocation2], %s221
        %p223 = pneg %p60
        %p224 = pneg %p57
        %p225 = pneg %p81
        %p226 = pneg %p78
        %p227 = pneg %p102
        %p228 = pneg %p99
        %p229 = pneg %p130
        %p230 = pneg %p127
        %s231 = sand.u32 %s117, 1
        %s232 = scalar_lea.sflag [#allocation4], %s231
        %s233 = sand.u32 %s117, 1
        %s234 = smul.addr %s233, 2
        %s235 = scalar_lea.vmem [#allocation5], %s234
        %p236 = pneg %p158
        %p237 = pneg %p155
        %s238 = sand.u32 %s145, 1
        %s239 = scalar_lea.sflag [#allocation7], %s238
        %s240 = sand.u32 %s145, 1
        %s241 = smul.addr %s240, 2
        %s242 = scalar_lea.vmem [#allocation6], %s241
        %v243 = vld [vmem:[%s213] sm:$0x3]
        %v244 = vcvt.s32.f32 %v243
        %v245 = vmul.f32 %v244, 1.5258789e-05
        %v246 = vfloor.f32 %v245
        %v247 = vmul.f32 %v246, 65536.0
        %v248 = vsub.f32 %v244, %v247
        %v249 = vmul.f32 %v248, 0.00390625
        %v250 = vfloor.f32 %v249
        %v251 = vmul.f32 %v250, 256.0
        %v252 = vsub.f32 %v248, %v251
        %v253 = vld [vmem:[%s2] sm:$0xf]
        %vm254 = vcmask 31744
        %v256 = vsel %vm254, %v251, 0
        %vm258 = vcmask 1043456
        %v260 = vsel %vm258, %v253, 0
        %262 = vmatprep.subr.mxu0 0.0
        %263 = vmatpush1.msra.mxu0 %v260
        %264 = vmatprep.subr.mxu0 0.0
        %265 = vmatpush1.msra.mxu0 0.0
        %266 = vmatprep.subr.mxu0 0.0
        %267 = vmatpush1.msra.mxu0 0.0
        %268 = vmatprep.subr.mxu0 0.0
        %269 = vmatpush1.msra.mxu0 0.0
        %270 = vmatprep.subr.mxu0 0.0
        %271 = vmatpush1.msra.mxu0 0.0
        %272 = vmatprep.subr.mxu0 0.0
        %273 = vmatpush1.msra.mxu0 0.0
        %274 = vmatprep.subr.mxu0 0.0
        %275 = vmatpush1.msra.mxu0 0.0
        %276 = vmatprep.subr.mxu0 0.0
        %277 = vmatpush1.msra.mxu0 0.0
        %278 = vmatprep.subr.mxu0 0.0
        %279 = vmatpush1.msra.mxu0 0.0
        %280 = vmatprep.subr.mxu0 0.0
        %281 = vmatpush1.msra.mxu0 0.0
        %282 = vmatprep.subr.mxu0 0.0
        %283 = vmatpush1.msra.mxu0 0.0
        %284 = vmatprep.subr.mxu0 0.0
        %285 = vmatpush1.msra.mxu0 0.0
        %286 = vmatprep.subr.mxu0 0.0
        %287 = vmatpush1.msra.mxu0 0.0
        %288 = vmatprep.subr.mxu0 0.0
        %289 = vmatpush1.msra.mxu0 0.0
        %290 = vmatprep.subr.mxu0 0.0
        %291 = vmatpush1.msra.mxu0 0.0
        %292 = vmatprep.subr.mxu0 0.0
        %293 = vmatpush1.msra.mxu0 0.0
        %294 = vmatprep.subr.mxu0 0.0
        %295 = vmatpush1.msra.mxu0 0.0
        %296 = vmatprep.subr.mxu0 0.0
        %297 = vmatpush1.msra.mxu0 0.0
        %298 = vmatprep.subr.mxu0 0.0
        %299 = vmatpush1.msra.mxu0 0.0
        %300 = vmatprep.subr.mxu0 0.0
        %301 = vmatpush1.msra.mxu0 0.0
        %302 = vmatprep.subr.mxu0 0.0
        %303 = vmatpush1.msra.mxu0 0.0
        %304 = vmatprep.subr.mxu0 0.0
        %305 = vmatpush1.msra.mxu0 0.0
        %306 = vmatprep.subr.mxu0 0.0
        %307 = vmatpush1.msra.mxu0 0.0
        %308 = vmatprep.subr.mxu0 0.0
        %309 = vmatpush1.msra.mxu0 0.0
        %310 = vmatprep.subr.mxu0 0.0
        %311 = vmatpush1.msra.mxu0 0.0
        %312 = vmatprep.subr.mxu0 0.0
        %313 = vmatpush1.msra.mxu0 0.0
        %314 = vmatprep.subr.mxu0 0.0
        %315 = vmatpush1.msra.mxu0 0.0
        %316 = vmatprep.subr.mxu0 0.0
        %317 = vmatpush1.msra.mxu0 0.0
        %318 = vmatprep.subr.mxu0 0.0
        %319 = vmatpush1.msra.mxu0 0.0
        %320 = vmatprep.subr.mxu0 0.0
        %321 = vmatpush1.msra.mxu0 0.0
        %322 = vmatprep.subr.mxu0 0.0
        %323 = vmatpush1.msra.mxu0 0.0
        %324 = vmatprep.subr.mxu0 0.0
        %325 = vmatpush1.msra.mxu0 0.0
        %326 = vmatprep.mubr.f32.mxu0 0.0
        %327 = vmatmul.mubr.f32.gmra.mrb[0].mxu0 %v256
        %v328 = vpop.f32.mrb[0].mxu0
        %v329 = vadd.f32 0.0, %v328
        %v330 = vpop.f32.mrb[0].mxu0
        %331 = vdwg.mxu0
        %v333 = vsel %vm254, %v247, 0
        %335 = vmatprep.subr.mxu0 0.0
        %336 = vmatpush1.msra.mxu0 %v260
        %337 = vmatprep.subr.mxu0 0.0
        %338 = vmatpush1.msra.mxu0 0.0
        %339 = vmatprep.subr.mxu0 0.0
        %340 = vmatpush1.msra.mxu0 0.0
        %341 = vmatprep.subr.mxu0 0.0
        %342 = vmatpush1.msra.mxu0 0.0
        %343 = vmatprep.subr.mxu0 0.0
        %344 = vmatpush1.msra.mxu0 0.0
        %345 = vmatprep.subr.mxu0 0.0
        %346 = vmatpush1.msra.mxu0 0.0
        %347 = vmatprep.subr.mxu0 0.0
        %348 = vmatpush1.msra.mxu0 0.0
        %349 = vmatprep.subr.mxu0 0.0
        %350 = vmatpush1.msra.mxu0 0.0
        %351 = vmatprep.subr.mxu0 0.0
        %352 = vmatpush1.msra.mxu0 0.0
        %353 = vmatprep.subr.mxu0 0.0
        %354 = vmatpush1.msra.mxu0 0.0
        %355 = vmatprep.subr.mxu0 0.0
        %356 = vmatpush1.msra.mxu0 0.0
        %357 = vmatprep.subr.mxu0 0.0
        %358 = vmatpush1.msra.mxu0 0.0
        %359 = vmatprep.subr.mxu0 0.0
        %360 = vmatpush1.msra.mxu0 0.0
        %361 = vmatprep.subr.mxu0 0.0
        %362 = vmatpush1.msra.mxu0 0.0
        %363 = vmatprep.subr.mxu0 0.0
        %364 = vmatpush1.msra.mxu0 0.0
        %365 = vmatprep.subr.mxu0 0.0
        %366 = vmatpush1.msra.mxu0 0.0
        %367 = vmatprep.subr.mxu0 0.0
        %368 = vmatpush1.msra.mxu0 0.0
        %369 = vmatprep.subr.mxu0 0.0
        %370 = vmatpush1.msra.mxu0 0.0
        %371 = vmatprep.subr.mxu0 0.0
        %372 = vmatpush1.msra.mxu0 0.0
        %373 = vmatprep.subr.mxu0 0.0
        %374 = vmatpush1.msra.mxu0 0.0
        %375 = vmatprep.subr.mxu0 0.0
        %376 = vmatpush1.msra.mxu0 0.0
        %377 = vmatprep.subr.mxu0 0.0
        %378 = vmatpush1.msra.mxu0 0.0
        %379 = vmatprep.subr.mxu0 0.0
        %380 = vmatpush1.msra.mxu0 0.0
        %381 = vmatprep.subr.mxu0 0.0
        %382 = vmatpush1.msra.mxu0 0.0
        %383 = vmatprep.subr.mxu0 0.0
        %384 = vmatpush1.msra.mxu0 0.0
        %385 = vmatprep.subr.mxu0 0.0
        %386 = vmatpush1.msra.mxu0 0.0
        %387 = vmatprep.subr.mxu0 0.0
        %388 = vmatpush1.msra.mxu0 0.0
        %389 = vmatprep.subr.mxu0 0.0
        %390 = vmatpush1.msra.mxu0 0.0
        %391 = vmatprep.subr.mxu0 0.0
        %392 = vmatpush1.msra.mxu0 0.0
        %393 = vmatprep.subr.mxu0 0.0
        %394 = vmatpush1.msra.mxu0 0.0
        %395 = vmatprep.subr.mxu0 0.0
        %396 = vmatpush1.msra.mxu0 0.0
        %397 = vmatprep.subr.mxu0 0.0
        %398 = vmatpush1.msra.mxu0 0.0
        %399 = vmatprep.mubr.f32.mxu0 0.0
        %400 = vmatmul.mubr.f32.gmra.mrb[0].mxu0 %v333
        %v401 = vpop.f32.mrb[0].mxu0
        %v402 = vadd.f32 %v329, %v401
        %v403 = vpop.f32.mrb[0].mxu0
        %404 = vdwg.mxu0
        %v406 = vsel %vm254, %v252, 0
        %408 = vmatprep.subr.mxu0 0.0
        %409 = vmatpush1.msra.mxu0 %v260
        %410 = vmatprep.subr.mxu0 0.0
        %411 = vmatpush1.msra.mxu0 0.0
        %412 = vmatprep.subr.mxu0 0.0
        %413 = vmatpush1.msra.mxu0 0.0
        %414 = vmatprep.subr.mxu0 0.0
        %415 = vmatpush1.msra.mxu0 0.0
        %416 = vmatprep.subr.mxu0 0.0
        %417 = vmatpush1.msra.mxu0 0.0
        %418 = vmatprep.subr.mxu0 0.0
        %419 = vmatpush1.msra.mxu0 0.0
        %420 = vmatprep.subr.mxu0 0.0
        %421 = vmatpush1.msra.mxu0 0.0
        %422 = vmatprep.subr.mxu0 0.0
        %423 = vmatpush1.msra.mxu0 0.0
        %424 = vmatprep.subr.mxu0 0.0
        %425 = vmatpush1.msra.mxu0 0.0
        %426 = vmatprep.subr.mxu0 0.0
        %427 = vmatpush1.msra.mxu0 0.0
        %428 = vmatprep.subr.mxu0 0.0
        %429 = vmatpush1.msra.mxu0 0.0
        %430 = vmatprep.subr.mxu0 0.0
        %431 = vmatpush1.msra.mxu0 0.0
        %432 = vmatprep.subr.mxu0 0.0
        %433 = vmatpush1.msra.mxu0 0.0
        %434 = vmatprep.subr.mxu0 0.0
        %435 = vmatpush1.msra.mxu0 0.0
        %436 = vmatprep.subr.mxu0 0.0
        %437 = vmatpush1.msra.mxu0 0.0
        %438 = vmatprep.subr.mxu0 0.0
        %439 = vmatpush1.msra.mxu0 0.0
        %440 = vmatprep.subr.mxu0 0.0
        %441 = vmatpush1.msra.mxu0 0.0
        %442 = vmatprep.subr.mxu0 0.0
        %443 = vmatpush1.msra.mxu0 0.0
        %444 = vmatprep.subr.mxu0 0.0
        %445 = vmatpush1.msra.mxu0 0.0
        %446 = vmatprep.subr.mxu0 0.0
        %447 = vmatpush1.msra.mxu0 0.0
        %448 = vmatprep.subr.mxu0 0.0
        %449 = vmatpush1.msra.mxu0 0.0
        %450 = vmatprep.subr.mxu0 0.0
        %451 = vmatpush1.msra.mxu0 0.0
        %452 = vmatprep.subr.mxu0 0.0
        %453 = vmatpush1.msra.mxu0 0.0
        %454 = vmatprep.subr.mxu0 0.0
        %455 = vmatpush1.msra.mxu0 0.0
        %456 = vmatprep.subr.mxu0 0.0
        %457 = vmatpush1.msra.mxu0 0.0
        %458 = vmatprep.subr.mxu0 0.0
        %459 = vmatpush1.msra.mxu0 0.0
        %460 = vmatprep.subr.mxu0 0.0
        %461 = vmatpush1.msra.mxu0 0.0
        %462 = vmatprep.subr.mxu0 0.0
        %463 = vmatpush1.msra.mxu0 0.0
        %464 = vmatprep.subr.mxu0 0.0
        %465 = vmatpush1.msra.mxu0 0.0
        %466 = vmatprep.subr.mxu0 0.0
        %467 = vmatpush1.msra.mxu0 0.0
        %468 = vmatprep.subr.mxu0 0.0
        %469 = vmatpush1.msra.mxu0 0.0
        %470 = vmatprep.subr.mxu0 0.0
        %471 = vmatpush1.msra.mxu0 0.0
        %472 = vmatprep.mubr.f32.mxu0 0.0
        %473 = vmatmul.mubr.f32.gmra.mrb[0].mxu0 %v406
        %v474 = vpop.f32.mrb[0].mxu0
        %v475 = vadd.f32 0.0, %v474
        %v476 = vpop.f32.mrb[0].mxu0
        %477 = vdwg.mxu0
        %v478 = vadd.f32 %v402, %v475
        %v479 = vld [vmem:[%s1] sm:$0x1]
        %v481 = vlaneseq
        %v482 = vshrl.u32 %v481, 7
        %v483 = vsub.s32 0, %v482
        %v484 = vrot.slane %v479, %v483
        %v486 = vmul.f32 %v478, %v484
        %v487 = vand.u32 2147483647, %v486
        %vm488 = vcmp.le.f32.partialorder %v487, 0.7853982
        %vm489 = vcmp.lt.s32.totalorder %v486, 0
        %v490 = vand.u32 %v486, 2139095040
        %v491 = vshrl.u32 %v490, 23
        %v492 = vsub.s32 %v491, 127
        %v493 = vand.u32 2147483647, %v486
        %v494 = vand.u32 %v493, 8388607
        %v495 = vor.u32 %v494, 8388608
        %v496 = vsub.s32 0, %v495
        %v497 = vadd.s32 %v492, 1
        %vm498 = vcmp.gt.s32.totalorder %v497, 0
        %v499 = vsel %vm498, %v497, 0
        %v500 = vshrl.u32 %v499, 5
        %v501 = vand.u32 %v499, 31
        %v502 = vsub.s32 32, %v501
        %v503 = vshrl.u32 683565275, %v502
        %v504 = vshll.u32 683565275, %v501
        %v505 = vshrl.u32 2475754826, %v502
        %v506 = vor.u32 %v504, %v505
        %v507 = vshll.u32 2475754826, %v501
        %v508 = vshrl.u32 2131351028, %v502
        %v509 = vor.u32 %v507, %v508
        %v510 = vshll.u32 2131351028, %v501
        %v511 = vshrl.u32 2102212464, %v502
        %v512 = vor.u32 %v510, %v511
        %v513 = vshll.u32 2102212464, %v501
        %v514 = vshrl.u32 920167782, %v502
        %v515 = vor.u32 %v513, %v514
        %v516 = vshll.u32 920167782, %v501
        %v517 = vshrl.u32 1326507024, %v502
        %v518 = vor.u32 %v516, %v517
        %vm519 = vcmp.lt.s32.totalorder %v500, 1
        %vm520 = vcmp.lt.s32.totalorder %v500, 2
        %vm521 = vcmp.lt.s32.totalorder %v500, 3
        %vm522 = vcmp.lt.s32.totalorder %v500, 4
        %v523 = vsel %vm519, %v503, %v506
        %v524 = vsel %vm522, %v512, 2102212464
        %v525 = vsel %vm521, %v509, %v524
        %v526 = vsel %vm520, %v523, %v525
        %v527 = vsel %vm519, %v506, %v509
        %v528 = vsel %vm522, %v515, 920167782
        %v529 = vsel %vm521, %v512, %v528
        %v530 = vsel %vm520, %v527, %v529
        %v531 = vsel %vm519, %v509, %v512
        %v532 = vsel %vm522, %v518, 1326507024
        %v533 = vsel %vm521, %v515, %v532
        %v534 = vsel %vm520, %v531, %v533
        %v535 = vshll.u32 %v495, 8
        %v536 = vmul.u32.u64.compose %v535, %v534
        %v537 = vextract.low.u32 %v536
        %v538 = vextract.high.u32 %v536
        %v539 = vmul.u32.u64.compose %v535, %v530
        %v540 = vextract.low.u32 %v539
        %v541 = vextract.high.u32 %v539
        %v542 = vmul.u32 %v535, %v526
        %v543 = vadd.s32 %v538, %v540
        %vm544 = vc.u32 %v538, %v540
        %v545 = vadd.s32 %v541, 1
        %v546 = vsel %vm544, %v545, %v541
        %v547 = vadd.s32 %v542, %v546
        %v548 = vadd.s32 %v547, 536870912
        %v549 = vshrl.u32 %v548, 30
        %v550 = vshll.u32 %v549, 30
        %v551 = vsub.s32 %v547, %v550
        %vm552 = vcmp.lt.s32.totalorder %v551, 0
        %v553 = vsub.s32 0, %v551
        %v554 = vsel %vm552, %v553, %v551
        %v555 = vclz %v554
        %v556 = vsub.s32 %v555, 2
        %vm557 = vcmp.gt.s32.totalorder 0, %v556
        %v558 = vsel %vm557, 0, %v556
        %v559 = vsub.s32 32, %v558
        %v560 = vshll.u32 %v551, %v558
        %v561 = vshrl.u32 %v543, %v559
        %v562 = vor.u32 %v560, %v561
        %v563 = vsub.s32 4294967266, %v558
        %v564 = vadd.s32 %v563, 127
        %v565 = vshll.u32 %v564, 23
        %v566 = vor.u32 4788187, %v565
        %v567 = vand.u32 2147483647, %v566
        %v569 = vcvt.s32.f32 %v562
        %v570 = vmul.f32 %v569, %v567
        %v571 = vxor.u32 %v570, 2147483648
        %v572 = vsel %vm489, %v571, %v570
        %v573 = vsub.s32 4, %v549
        %v574 = vsel %vm489, %v573, %v549
        %v575 = vsel %vm488, %v486, %v572
        %v576 = vsel %vm488, 0, %v574
        %v577 = vcosq.f32.pop %v575
        %v578 = vsinq.f32.pop %v575
        %vm579 = vweird.f32 %v486
        %v580 = vand.u32 %v576, 3
        %vm581 = vcmp.lt.s32.totalorder %v580, 2
        %vm582 = vcmp.eq.s32.totalorder %v580, 0
        %v583 = vxor.u32 %v578, 2147483648
        %v584 = vsel %vm582, %v577, %v583
        %vm585 = vcmp.eq.s32.totalorder %v580, 2
        %v586 = vxor.u32 %v577, 2147483648
        %v587 = vsel %vm585, %v586, %v578
        %v588 = vsel %vm581, %v584, %v587
        %v589 = vsel %vm579, nan, %v588
        %590 = vst [vmem:[%s235] sm:$0x3] %v589
        %v591 = vand.u32 2147483647, %v486
        %vm592 = vcmp.le.f32.partialorder %v591, 0.7853982
        %vm593 = vcmp.lt.s32.totalorder %v486, 0
        %v594 = vand.u32 %v486, 2139095040
        %v595 = vshrl.u32 %v594, 23
        %v596 = vsub.s32 %v595, 127
        %v597 = vand.u32 2147483647, %v486
        %v598 = vand.u32 %v597, 8388607
        %v599 = vor.u32 %v598, 8388608
        %v600 = vsub.s32 0, %v599
        %v601 = vadd.s32 %v596, 1
        %vm602 = vcmp.gt.s32.totalorder %v601, 0
        %v603 = vsel %vm602, %v601, 0
        %v604 = vshrl.u32 %v603, 5
        %v605 = vand.u32 %v603, 31
        %v606 = vsub.s32 32, %v605
        %v607 = vshrl.u32 683565275, %v606
        %v608 = vshll.u32 683565275, %v605
        %v609 = vshrl.u32 2475754826, %v606
        %v610 = vor.u32 %v608, %v609
        %v611 = vshll.u32 2475754826, %v605
        %v612 = vshrl.u32 2131351028, %v606
        %v613 = vor.u32 %v611, %v612
        %v614 = vshll.u32 2131351028, %v605
        %v615 = vshrl.u32 2102212464, %v606
        %v616 = vor.u32 %v614, %v615
        %v617 = vshll.u32 2102212464, %v605
        %v618 = vshrl.u32 920167782, %v606
        %v619 = vor.u32 %v617, %v618
        %v620 = vshll.u32 920167782, %v605
        %v621 = vshrl.u32 1326507024, %v606
        %v622 = vor.u32 %v620, %v621
        %vm623 = vcmp.lt.s32.totalorder %v604, 1
        %vm624 = vcmp.lt.s32.totalorder %v604, 2
        %vm625 = vcmp.lt.s32.totalorder %v604, 3
        %vm626 = vcmp.lt.s32.totalorder %v604, 4
        %v627 = vsel %vm623, %v607, %v610
        %v628 = vsel %vm626, %v616, 2102212464
        %v629 = vsel %vm625, %v613, %v628
        %v630 = vsel %vm624, %v627, %v629
        %v631 = vsel %vm623, %v610, %v613
        %v632 = vsel %vm626, %v619, 920167782
        %v633 = vsel %vm625, %v616, %v632
        %v634 = vsel %vm624, %v631, %v633
        %v635 = vsel %vm623, %v613, %v616
        %v636 = vsel %vm626, %v622, 1326507024
        %v637 = vsel %vm625, %v619, %v636
        %v638 = vsel %vm624, %v635, %v637
        %v639 = vshll.u32 %v599, 8
        %v640 = vmul.u32.u64.compose %v639, %v638
        %v641 = vextract.low.u32 %v640
        %v642 = vextract.high.u32 %v640
        %v643 = vmul.u32.u64.compose %v639, %v634
        %v644 = vextract.low.u32 %v643
        %v645 = vextract.high.u32 %v643
        %v646 = vmul.u32 %v639, %v630
        %v647 = vadd.s32 %v642, %v644
        %vm648 = vc.u32 %v642, %v644
        %v649 = vadd.s32 %v645, 1
        %v650 = vsel %vm648, %v649, %v645
        %v651 = vadd.s32 %v646, %v650
        %v652 = vadd.s32 %v651, 536870912
        %v653 = vshrl.u32 %v652, 30
        %v654 = vshll.u32 %v653, 30
        %v655 = vsub.s32 %v651, %v654
        %vm656 = vcmp.lt.s32.totalorder %v655, 0
        %v657 = vsub.s32 0, %v655
        %v658 = vsel %vm656, %v657, %v655
        %v659 = vclz %v658
        %v660 = vsub.s32 %v659, 2
        %vm661 = vcmp.gt.s32.totalorder 0, %v660
        %v662 = vsel %vm661, 0, %v660
        %v663 = vsub.s32 32, %v662
        %v664 = vshll.u32 %v655, %v662
        %v665 = vshrl.u32 %v647, %v663
        %v666 = vor.u32 %v664, %v665
        %v667 = vsub.s32 4294967266, %v662
        %v668 = vadd.s32 %v667, 127
        %v669 = vshll.u32 %v668, 23
        %v670 = vor.u32 4788187, %v669
        %v671 = vand.u32 2147483647, %v670
        %v673 = vcvt.s32.f32 %v666
        %v674 = vmul.f32 %v673, %v671
        %v675 = vxor.u32 %v674, 2147483648
        %v676 = vsel %vm593, %v675, %v674
        %v677 = vsub.s32 4, %v653
        %v678 = vsel %vm593, %v677, %v653
        %v679 = vsel %vm592, %v486, %v676
        %v680 = vsel %vm592, 0, %v678
        %v681 = vcosq.f32.pop %v679
        %v682 = vsinq.f32.pop %v679
        %vm683 = vweird.f32 %v486
        %v684 = vadd.s32 %v680, 3
        %v685 = vand.u32 %v684, 3
        %vm686 = vcmp.lt.s32.totalorder %v685, 2
        %vm687 = vcmp.eq.s32.totalorder %v685, 0
        %v688 = vxor.u32 %v682, 2147483648
        %v689 = vsel %vm687, %v681, %v688
        %vm690 = vcmp.eq.s32.totalorder %v685, 2
        %v691 = vxor.u32 %v681, 2147483648
        %v692 = vsel %vm690, %v691, %v682
        %v693 = vsel %vm686, %v689, %v692
        %v694 = vsel %vm683, nan, %v693
        %695 = vst [vmem:[%s242] sm:$0x3] %v694
        %s696 = sand.u32 %s117, 1
        %s697 = scalar_lea.sflag [#allocation4], %s696
        %s698 = sand.u32 %s117, 1
        %s699 = smul.addr %s698, 2
        %s700 = scalar_lea.vmem [#allocation5], %s699
        %s701 = sand.u32 %s145, 1
        %s702 = scalar_lea.sflag [#allocation7], %s701
        %s703 = sand.u32 %s145, 1
        %s704 = smul.addr %s703, 2
        %s705 = scalar_lea.vmem [#allocation6], %s704
        // Predicated region
        $region37: #{tpu_custom_call.1} parent=31 // pred_check
          %p706 = pneg %p127
        $region38: #{tpu_custom_call.1} parent=31 // pred_check_branch
          %708 = sbr.rel (%p706) target = $region40
        $region39: #{tpu_custom_call.1} parent=31 // pred_region
          %s710 = ssub.s32 32, 32
          %711 = vsyncadd %s697, %s710
          %s712 = sadd.s32 %s30, %s29
          %s713 = smul.addr %s712, 32
          %s714 = scalar_lea.hbm %s3, %s713
          %s716 = sshll.u32 %s700, 4
          %s717 = int_to_ptr.vmem [resolvable:$true] %s716
          %719 = dma.vmem_to_hbm [thread:$0]  %s717, 32, %s714, %s697
        $region40: #{tpu_custom_call.1} parent=31 // pred_fallthru
          _
        // Predicated region
        $region41: #{tpu_custom_call.1} parent=31 // pred_check
          %p720 = pneg %p155
        $region42: #{tpu_custom_call.1} parent=31 // pred_check_branch
          %722 = sbr.rel (%p720) target = $region44
        $region43: #{tpu_custom_call.1} parent=31 // pred_region
          %s724 = ssub.s32 32, 32
          %725 = vsyncadd %s702, %s724
          %s726 = sadd.s32 %s30, %s29
          %s727 = smul.addr %s726, 32
          %s728 = scalar_lea.hbm %s4, %s727
          %s730 = sshll.u32 %s705, 4
          %s731 = int_to_ptr.vmem [resolvable:$true] %s730
          %733 = dma.vmem_to_hbm [thread:$0]  %s731, 32, %s728, %s702
        $region44: #{tpu_custom_call.1} parent=31 // pred_fallthru
          _
      $region32: #{tpu_custom_call.1} parent=5 // pred_fallthru
        _
      %p734 = scmp.le.s32.totalorder 2, %s20
      // Predicated region
      $region45: #{tpu_custom_call.1} parent=5 // pred_check
        %p735 = pneg %p734
      $region46: #{tpu_custom_call.1} parent=5 // pred_check_branch
        %737 = sbr.rel (%p735) target = $region48
      $region47: #{tpu_custom_call.1} parent=5 // pred_region
        %s738 = ssub.s32 %s20, 2
        // Predicated region
        $region49: #{tpu_custom_call.1} parent=47 // pred_check
          %p739 = pneg %p133
        $region50: #{tpu_custom_call.1} parent=47 // pred_check_branch
          %741 = sbr.rel (%p739) target = $region52
        $region51: #{tpu_custom_call.1} parent=47 // pred_region
          %s742 = sand.u32 %s118, 1
          %s743 = scalar_lea.sflag [#allocation4], %s742
          %s744 = sand.u32 %s118, 1
          %s745 = smul.addr %s744, 2
          %s746 = scalar_lea.vmem [#allocation5], %s745
          %747 = dma.done %s743, 32
        $region52: #{tpu_custom_call.1} parent=47 // pred_fallthru
          _
        // Predicated region
        $region53: #{tpu_custom_call.1} parent=47 // pred_check
          %p748 = pneg %p161
        $region54: #{tpu_custom_call.1} parent=47 // pred_check_branch
          %750 = sbr.rel (%p748) target = $region56
        $region55: #{tpu_custom_call.1} parent=47 // pred_region
          %s751 = sand.u32 %s146, 1
          %s752 = scalar_lea.sflag [#allocation7], %s751
          %s753 = sand.u32 %s146, 1
          %s754 = smul.addr %s753, 2
          %s755 = scalar_lea.vmem [#allocation6], %s754
          %756 = dma.done %s752, 32
        $region56: #{tpu_custom_call.1} parent=47 // pred_fallthru
          _
      $region48: #{tpu_custom_call.1} parent=5 // pred_fallthru
        _
    $region6: #{tpu_custom_call.1} parent=1 // loop_footer
      %s24 = sadd.s32 1, %s20
    $region7: #{tpu_custom_call.1} parent=1 // loop_footer_branch
      %19 = sbr.rel target = $region3
    $region8: #{tpu_custom_call.1} parent=1 // loop_exit
      _
    %757 = vsyncpa [#allocation3], 1
    %s758 = scalar_lea.sflag [#allocation3], 1
    %759 = vsyncpa %s758, 1
    %760 = vsyncpa [#allocation4], 1
    %s761 = scalar_lea.sflag [#allocation4], 1
    %762 = vsyncpa %s761, 1
    %763 = vsyncpa [#allocation7], 1
    %s764 = scalar_lea.sflag [#allocation7], 1
    %765 = vsyncpa %s764, 1

</llo_original>
